<compile_context>
chip_gen: v6e
topology: v6e:2x2x1
jax: 0.10.0
libtpu: 0.0.40
codegen_flags: <defaults>
</compile_context>

<pallas_src>
from functools import partial

import jax
import jax.numpy as jnp
from jax.experimental import pallas as pl
from jax.experimental.pallas import tpu as pltpu

_LANE = 128  # lane width / MXU-friendly padding granule


def _round_up(v, m):
    return ((v + m - 1) // m) * m


def _safe_inv_pow(deg, p):
    """deg**(-p) with 0 -> 0, without evaluating 0**(-p) on the dead branch."""
    safe = jnp.where(deg > 0, deg, 1.0)
    return jnp.where(deg > 0, safe ** (-p), 0.0)


# ---------------------------------------------------------------------------
# Fused Pallas kernel: both DirectedGCNConv layers in one call
#   layer 1 (reversed edges): h   = relu(Dout^-b . S^T . (Din^-a . x) . W1 + b1)
#   layer 2 (original edges): out = Din^-b . S . (Dout^-a . (h . W2)) + b2
# ---------------------------------------------------------------------------
def _fused_gcn_encoder_kernel(adj_ref, x_ref, w1_ref, b1_ref, w2_ref, b2_ref,
                              din_a_ref, dout_b_ref, dout_a_ref, din_b_ref,
                              out_ref):
    adj = adj_ref[...]                                    # (Np, Np) bf16, S[dst, src]

    # ----- layer 1: reversed edges -> aggregate with S^T, aggregate-first order
    xs = (x_ref[...] * din_a_ref[...]).astype(jnp.bfloat16)   # f32 scale, bf16 MXU input
    agg1 = jax.lax.dot_general(                           # S^T @ xs  (contract S rows)
        adj, xs, (((0,), (0,)), ((), ())),
        preferred_element_type=jnp.float32)               # (Np, Cin_p) f32
    h = jnp.dot(agg1.astype(jnp.bfloat16), w1_ref[...],
                preferred_element_type=jnp.float32)       # (Np, H_p) f32
    h = jnp.maximum(h * dout_b_ref[...] + b1_ref[...], 0.0)   # f32 VPU epilogue (ReLU)

    # ----- layer 2: original edges -> transform-first order
    hs = (h * dout_a_ref[...]).astype(jnp.bfloat16)
    hw = jnp.dot(hs, w2_ref[...],
                 preferred_element_type=jnp.float32)      # (Np, Cout_p) f32
    agg2 = jnp.dot(adj, hw.astype(jnp.bfloat16),
                   preferred_element_type=jnp.float32)    # S @ hw
    out_ref[...] = (agg2 * din_b_ref[...] + b2_ref[...]).astype(out_ref.dtype)


def fused_gcn_encoder(adj_bf16, x_pad, w1, b1, w2, b2,
                      din_a, dout_b, dout_a, din_b):
    n_pad, cin_p = x_pad.shape
    h_p = w1.shape[1]
    cout_p = w2.shape[1]

    flops = (2 * n_pad * n_pad * (cin_p + cout_p)          # two N x N aggregations
             + 2 * n_pad * cin_p * h_p                     # W1 transform
             + 2 * n_pad * h_p * cout_p)                   # W2 transform
    operands = (adj_bf16, x_pad, w1, b1, w2, b2, din_a, dout_b, dout_a, din_b)
    bytes_accessed = sum(int(a.size) * a.dtype.itemsize for a in operands) \
                     + n_pad * cout_p * 4

    vmem = pl.BlockSpec(memory_space=pltpu.MemorySpace.VMEM)
    return pl.pallas_call(
        _fused_gcn_encoder_kernel,
        out_shape=jax.ShapeDtypeStruct((n_pad, cout_p), jnp.float32),
        in_specs=[vmem] * len(operands),
        out_specs=vmem,
        cost_estimate=pl.CostEstimate(flops=int(flops), transcendentals=0,
                                      bytes_accessed=int(bytes_accessed)),
    )(*operands)


# ---------------------------------------------------------------------------
# Glue (jitted): build a single structural adjacency + degree scalings, pad,
# call the fused kernel, slice the padding back off.
# ---------------------------------------------------------------------------
@partial(jax.jit, static_argnames=("alpha", "beta", "self_loops", "out_channels"))
def _encoder_forward(x, edge_index, w1, b1, w2, b2, *,
                     alpha, beta, self_loops, out_channels):
    n = x.shape[0]
    n_pad = _round_up(n, _LANE)
    cin_p = w1.shape[0]

    src = edge_index[0]
    dst = edge_index[1]
    if self_loops:
        loops = jnp.arange(n, dtype=edge_index.dtype)
        src = jnp.concatenate([src, loops])
        dst = jnp.concatenate([dst, loops])

    # Single structural adjacency S[dst, src] (edge multiplicities, scatter-add
    # semantics), built once and shared by both layers (layer 1 uses S^T).
    adj = jnp.zeros((n_pad, n_pad), jnp.float32).at[dst, src].add(1.0)
    out_deg = jnp.sum(adj, axis=0)        # out-degree of source nodes (columns)
    in_deg = jnp.sum(adj, axis=1)         # in-degree of destination nodes (rows)

    din_a = _safe_inv_pow(in_deg, alpha)[:, None]     # D_in^{-alpha}
    dout_b = _safe_inv_pow(out_deg, beta)[:, None]    # D_out^{-beta}
    dout_a = _safe_inv_pow(out_deg, alpha)[:, None]   # D_out^{-alpha}
    din_b = _safe_inv_pow(in_deg, beta)[:, None]      # D_in^{-beta}

    x_pad = jnp.pad(x.astype(jnp.float32),
                    ((0, n_pad - n), (0, cin_p - x.shape[1])))

    out_pad = fused_gcn_encoder(adj.astype(jnp.bfloat16), x_pad,
                                w1, b1, w2, b2,
                                din_a, dout_b, dout_a, din_b)
    return out_pad[:n, :out_channels]


# ---------------------------------------------------------------------------
# TargetGCNConvEncoder
# ---------------------------------------------------------------------------
class TargetGCNConvEncoder:
    def __init__(self, key, in_channels, hidden_channels, out_channels,
                 alpha=1.0, beta=0.0, self_loops=True, adaptive=False):
        # TODO(synk): adaptive=True (learnable alpha/beta) is not modeled.
        self.alpha = float(alpha)
        self.beta = float(beta)
        self.self_loops = bool(self_loops)
        self.out_channels = int(out_channels)

        cin_p = _round_up(in_channels, _LANE)
        h_p = _round_up(hidden_channels, _LANE)
        cout_p = _round_up(out_channels, _LANE)

        k1, k2, k3, k4 = jax.random.split(key, 4)
        s1 = 1.0 / (in_channels ** 0.5)
        s2 = 1.0 / (hidden_channels ** 0.5)
        w1 = jax.random.uniform(k1, (in_channels, hidden_channels), jnp.float32, -s1, s1)
        b1 = jax.random.uniform(k2, (hidden_channels,), jnp.float32, -s1, s1)
        w2 = jax.random.uniform(k3, (hidden_channels, out_channels), jnp.float32, -s2, s2)
        b2 = jax.random.uniform(k4, (out_channels,), jnp.float32, -s2, s2)

        # Zero-pad channels to 128 lanes once at init; weights bf16 (MXU), biases f32 (VPU).
        self.w1 = jnp.pad(w1, ((0, cin_p - in_channels),
                               (0, h_p - hidden_channels))).astype(jnp.bfloat16)
        self.b1 = jnp.pad(b1, (0, h_p - hidden_channels)).reshape(1, h_p)
        self.w2 = jnp.pad(w2, ((0, h_p - hidden_channels),
                               (0, cout_p - out_channels))).astype(jnp.bfloat16)
        self.b2 = jnp.pad(b2, (0, cout_p - out_channels)).reshape(1, cout_p)

    def __call__(self, x, edge_index):
        return _encoder_forward(x, edge_index, self.w1, self.b1, self.w2, self.b2,
                                alpha=self.alpha, beta=self.beta,
                                self_loops=self.self_loops,
                                out_channels=self.out_channels)


if __name__ == "__main__":
    key = jax.random.PRNGKey(0)
    k_x, k_e, k_p = jax.random.split(key, 3)

    num_nodes = 32
    num_edges = 64
    in_channels, hidden_channels, out_channels = 16, 32, 16

    x = jax.random.normal(k_x, (num_nodes, in_channels), jnp.float32)
    edge_index = jax.random.randint(k_e, (2, num_edges), 0, num_nodes, jnp.int32)

    encoder = TargetGCNConvEncoder(k_p, in_channels, hidden_channels, out_channels)
    out = encoder(x, edge_index)
    jax.block_until_ready(out)

    assert out.shape == (num_nodes, out_channels), out.shape
    assert jnp.all(jnp.isfinite(out))
    print("KERNEL_OK")
</pallas_src>

<mosaic_0001>
module attributes {stable_mosaic.version = 11 : i64} {
  func.func private @main(%arg0: i32) attributes {dimension_semantics = [#tpu.dimension_semantics<core_parallel>], iteration_bounds = array<i64: 2>, tpu.core_type = #tpu.core_type<sc_scalar_subcore>, window_params = []} {
    return
  }
}

module attributes {stable_mosaic.version = 11 : i64} {
  func.func private @main(%arg0: i32) attributes {dimension_semantics = [#tpu.dimension_semantics<core_parallel>], iteration_bounds = array<i64: 2>, tpu.core_type = #tpu.core_type<sc_scalar_subcore>, window_params = []} {
    return
  }
}

module attributes {stable_mosaic.version = 11 : i64} {
  func.func @_fused_gcn_encoder_kernel(%arg0: memref<128x128xbf16, #tpu.memory_space<vmem>>, %arg1: memref<128x128xf32, #tpu.memory_space<vmem>>, %arg2: memref<128x128xbf16, #tpu.memory_space<vmem>>, %arg3: memref<1x128xf32, #tpu.memory_space<vmem>>, %arg4: memref<128x128xbf16, #tpu.memory_space<vmem>>, %arg5: memref<1x128xf32, #tpu.memory_space<vmem>>, %arg6: memref<128x1xf32, #tpu.memory_space<vmem>>, %arg7: memref<128x1xf32, #tpu.memory_space<vmem>>, %arg8: memref<128x1xf32, #tpu.memory_space<vmem>>, %arg9: memref<128x1xf32, #tpu.memory_space<vmem>>, %arg10: memref<128x128xf32, #tpu.memory_space<vmem>>) attributes {dimension_semantics = [], scalar_prefetch = 0 : i64, scratch_operands = 0 : i64, tpu.core_type = #tpu.core_type<tc>} {
    %c0 = arith.constant 0 : index
    %c0_0 = arith.constant 0 : index
    %0 = vector.load %arg0[%c0, %c0_0] : memref<128x128xbf16, #tpu.memory_space<vmem>>, vector<128x128xbf16>
    %c0_1 = arith.constant 0 : index
    %c0_2 = arith.constant 0 : index
    %1 = vector.load %arg1[%c0_1, %c0_2] : memref<128x128xf32, #tpu.memory_space<vmem>>, vector<128x128xf32>
    %c0_3 = arith.constant 0 : index
    %c0_4 = arith.constant 0 : index
    %2 = vector.load %arg6[%c0_3, %c0_4] : memref<128x1xf32, #tpu.memory_space<vmem>>, vector<128x1xf32>
    %3 = vector.broadcast %2 : vector<128x1xf32> to vector<128x128xf32>
    %4 = arith.mulf %1, %3 : vector<128x128xf32>
    %5 = arith.truncf %4 : vector<128x128xf32> to vector<128x128xbf16>
    %cst = arith.constant dense<0.000000e+00> : vector<128x128xf32>
    %6 = tpu.matmul %0, %5, %cst {dimension_numbers = #tpu.dot_dimension_numbers<[0], [0], [1], [1], [0, 1, 1, 1], [], []>} : vector<128x128xbf16>, vector<128x128xbf16>, vector<128x128xf32> -> vector<128x128xf32>
    %7 = arith.truncf %6 : vector<128x128xf32> to vector<128x128xbf16>
    %c0_5 = arith.constant 0 : index
    %c0_6 = arith.constant 0 : index
    %8 = vector.load %arg2[%c0_5, %c0_6] : memref<128x128xbf16, #tpu.memory_space<vmem>>, vector<128x128xbf16>
    %cst_7 = arith.constant dense<0.000000e+00> : vector<128x128xf32>
    %9 = tpu.matmul %7, %8, %cst_7 {dimension_numbers = #tpu.dot_dimension_numbers<[1], [0], [0], [1], [0, 0, 1, 1], [], []>} : vector<128x128xbf16>, vector<128x128xbf16>, vector<128x128xf32> -> vector<128x128xf32>
    %c0_8 = arith.constant 0 : index
    %c0_9 = arith.constant 0 : index
    %10 = vector.load %arg7[%c0_8, %c0_9] : memref<128x1xf32, #tpu.memory_space<vmem>>, vector<128x1xf32>
    %11 = vector.broadcast %10 : vector<128x1xf32> to vector<128x128xf32>
    %12 = arith.mulf %9, %11 : vector<128x128xf32>
    %c0_10 = arith.constant 0 : index
    %c0_11 = arith.constant 0 : index
    %13 = vector.load %arg3[%c0_10, %c0_11] : memref<1x128xf32, #tpu.memory_space<vmem>>, vector<1x128xf32>
    %14 = vector.broadcast %13 : vector<1x128xf32> to vector<128x128xf32>
    %15 = arith.addf %12, %14 : vector<128x128xf32>
    %cst_12 = arith.constant 0.000000e+00 : f32
    %16 = vector.broadcast %cst_12 : f32 to vector<128x128xf32>
    %17 = arith.maximumf %15, %16 : vector<128x128xf32>
    %c0_13 = arith.constant 0 : index
    %c0_14 = arith.constant 0 : index
    %18 = vector.load %arg8[%c0_13, %c0_14] : memref<128x1xf32, #tpu.memory_space<vmem>>, vector<128x1xf32>
    %19 = vector.broadcast %18 : vector<128x1xf32> to vector<128x128xf32>
    %20 = arith.mulf %17, %19 : vector<128x128xf32>
    %21 = arith.truncf %20 : vector<128x128xf32> to vector<128x128xbf16>
    %c0_15 = arith.constant 0 : index
    %c0_16 = arith.constant 0 : index
    %22 = vector.load %arg4[%c0_15, %c0_16] : memref<128x128xbf16, #tpu.memory_space<vmem>>, vector<128x128xbf16>
    %cst_17 = arith.constant dense<0.000000e+00> : vector<128x128xf32>
    %23 = tpu.matmul %21, %22, %cst_17 {dimension_numbers = #tpu.dot_dimension_numbers<[1], [0], [0], [1], [0, 0, 1, 1], [], []>} : vector<128x128xbf16>, vector<128x128xbf16>, vector<128x128xf32> -> vector<128x128xf32>
    %24 = arith.truncf %23 : vector<128x128xf32> to vector<128x128xbf16>
    %cst_18 = arith.constant dense<0.000000e+00> : vector<128x128xf32>
    %25 = tpu.matmul %0, %24, %cst_18 {dimension_numbers = #tpu.dot_dimension_numbers<[1], [0], [0], [1], [0, 0, 1, 1], [], []>} : vector<128x128xbf16>, vector<128x128xbf16>, vector<128x128xf32> -> vector<128x128xf32>
    %c0_19 = arith.constant 0 : index
    %c0_20 = arith.constant 0 : index
    %26 = vector.load %arg9[%c0_19, %c0_20] : memref<128x1xf32, #tpu.memory_space<vmem>>, vector<128x1xf32>
    %27 = vector.broadcast %26 : vector<128x1xf32> to vector<128x128xf32>
    %28 = arith.mulf %25, %27 : vector<128x128xf32>
    %c0_21 = arith.constant 0 : index
    %c0_22 = arith.constant 0 : index
    %29 = vector.load %arg5[%c0_21, %c0_22] : memref<1x128xf32, #tpu.memory_space<vmem>>, vector<1x128xf32>
    %30 = vector.broadcast %29 : vector<1x128xf32> to vector<128x128xf32>
    %31 = arith.addf %28, %30 : vector<128x128xf32>
    %c0_23 = arith.constant 0 : index
    %c0_24 = arith.constant 0 : index
    %32 = vector.load %arg10[%c0_23, %c0_24] : memref<128x128xf32, #tpu.memory_space<vmem>>, vector<128x128xf32>
    tpu.vector_store %arg10[%c0_23, %c0_24], %31 {strides = array<i32>} : memref<128x128xf32, #tpu.memory_space<vmem>>, vector<128x128xf32>,
    return
  }
}

</mosaic_0001>

<llo_original>
// kernel: _encoder_forward.1
$region0: #{_encoder_forward.1}
  #allocation0 [shape = 'u32[]', space=smem, size = 0x4, offset = 0x4, fixed_abs, tag = 'smem constant byte address 0x4 - core index']
  #allocation1 [shape = 'u32[144,128]{1,0:T(1,128)}', space=vmem, size = 0x12000, scoped, tag = 'internal scratch']
  %s0 = inlined_call_operand.vmem [shape: bf16[128,128], index: 0, kind: input, shape index: {}]
  %s1 = inlined_call_operand.vmem [shape: f32[128,128], index: 1, kind: input, shape index: {}]
  %s2 = inlined_call_operand.vmem [shape: bf16[128,128], index: 2, kind: input, shape index: {}]
  %s3 = inlined_call_operand.vmem [shape: f32[1,128], index: 3, kind: input, shape index: {}]
  %s4 = inlined_call_operand.vmem [shape: bf16[128,128], index: 4, kind: input, shape index: {}]
  %s5 = inlined_call_operand.vmem [shape: f32[1,128], index: 5, kind: input, shape index: {}]
  %s6 = inlined_call_operand.vmem [shape: f32[128,1], index: 6, kind: input, shape index: {}]
  %s7 = inlined_call_operand.vmem [shape: f32[128,1], index: 7, kind: input, shape index: {}]
  %s8 = inlined_call_operand.vmem [shape: f32[128,1], index: 8, kind: input, shape index: {}]
  %s9 = inlined_call_operand.vmem [shape: f32[128,1], index: 9, kind: input, shape index: {}]
  %s10 = inlined_call_operand.vmem [shape: f32[128,128], index: 10, kind: output, shape index: {}]
  %s11 = sld [smem:[#allocation0]]
  $region50: #{_encoder_forward.1} parent=0
    _
  %s13 = ssub.s32 1, %s11
  %s14 = scalar_select 0, %s13, %s11
  // Predicated region
  $region2: #{_encoder_forward.1} parent=0 // pred_check
    _
  $region3: #{_encoder_forward.1} parent=0 // pred_check_branch
    %16 = sbr.rel (0) target = $region5
  $region4: #{_encoder_forward.1} parent=0 // pred_region
    _
  $region5: #{_encoder_forward.1} parent=0 // pred_fallthru
    _
  // Predicated region
  $region6: #{_encoder_forward.1} parent=0 // pred_check
    _
  $region7: #{_encoder_forward.1} parent=0 // pred_check_branch
    %18 = sbr.rel (0) target = $region9
  $region8: #{_encoder_forward.1} parent=0 // pred_region
    _
  $region9: #{_encoder_forward.1} parent=0 // pred_fallthru
    _
  // Predicated region
  $region10: #{_encoder_forward.1} parent=0 // pred_check
    _
  $region11: #{_encoder_forward.1} parent=0 // pred_check_branch
    %20 = sbr.rel (0) target = $region13
  $region12: #{_encoder_forward.1} parent=0 // pred_region
    _
  $region13: #{_encoder_forward.1} parent=0 // pred_fallthru
    _
  // Predicated region
  $region14: #{_encoder_forward.1} parent=0 // pred_check
    _
  $region15: #{_encoder_forward.1} parent=0 // pred_check_branch
    %22 = sbr.rel (0) target = $region17
  $region16: #{_encoder_forward.1} parent=0 // pred_region
    _
  $region17: #{_encoder_forward.1} parent=0 // pred_fallthru
    _
  // Predicated region
  $region18: #{_encoder_forward.1} parent=0 // pred_check
    _
  $region19: #{_encoder_forward.1} parent=0 // pred_check_branch
    %24 = sbr.rel (0) target = $region21
  $region20: #{_encoder_forward.1} parent=0 // pred_region
    _
  $region21: #{_encoder_forward.1} parent=0 // pred_fallthru
    _
  // Predicated region
  $region22: #{_encoder_forward.1} parent=0 // pred_check
    _
  $region23: #{_encoder_forward.1} parent=0 // pred_check_branch
    %26 = sbr.rel (0) target = $region25
  $region24: #{_encoder_forward.1} parent=0 // pred_region
    _
  $region25: #{_encoder_forward.1} parent=0 // pred_fallthru
    _
  // Predicated region
  $region26: #{_encoder_forward.1} parent=0 // pred_check
    _
  $region27: #{_encoder_forward.1} parent=0 // pred_check_branch
    %28 = sbr.rel (0) target = $region29
  $region28: #{_encoder_forward.1} parent=0 // pred_region
    _
  $region29: #{_encoder_forward.1} parent=0 // pred_fallthru
    _
  // Predicated region
  $region30: #{_encoder_forward.1} parent=0 // pred_check
    _
  $region31: #{_encoder_forward.1} parent=0 // pred_check_branch
    %30 = sbr.rel (0) target = $region33
  $region32: #{_encoder_forward.1} parent=0 // pred_region
    _
  $region33: #{_encoder_forward.1} parent=0 // pred_fallthru
    _
  // Predicated region
  $region34: #{_encoder_forward.1} parent=0 // pred_check
    _
  $region35: #{_encoder_forward.1} parent=0 // pred_check_branch
    %32 = sbr.rel (0) target = $region37
  $region36: #{_encoder_forward.1} parent=0 // pred_region
    _
  $region37: #{_encoder_forward.1} parent=0 // pred_fallthru
    _
  // Predicated region
  $region38: #{_encoder_forward.1} parent=0 // pred_check
    _
  $region39: #{_encoder_forward.1} parent=0 // pred_check_branch
    %34 = sbr.rel (0) target = $region41
  $region40: #{_encoder_forward.1} parent=0 // pred_region
    _
  $region41: #{_encoder_forward.1} parent=0 // pred_fallthru
    _
  %v36 = vld [vmem:[%s0] sm:$0xf]
  %v37 = vld [vmem:[%s0 + $0x4] sm:$0xf]
  %v38 = vld [vmem:[%s0 + $0x8] sm:$0xf]
  %v39 = vld [vmem:[%s0 + $0xc] sm:$0xf]
  %v40 = vld [vmem:[%s0 + $0x10] sm:$0xf]
  %v41 = vld [vmem:[%s0 + $0x14] sm:$0xf]
  %v42 = vld [vmem:[%s0 + $0x18] sm:$0xf]
  %v43 = vld [vmem:[%s0 + $0x1c] sm:$0xf]
  %v44 = vld [vmem:[%s0 + $0x20] sm:$0xf]
  %v45 = vld [vmem:[%s0 + $0x24] sm:$0xf]
  %v46 = vld [vmem:[%s0 + $0x28] sm:$0xf]
  %v47 = vld [vmem:[%s0 + $0x2c] sm:$0xf]
  %v48 = vld [vmem:[%s0 + $0x30] sm:$0xf]
  %v49 = vld [vmem:[%s0 + $0x34] sm:$0xf]
  %v50 = vld [vmem:[%s0 + $0x38] sm:$0xf]
  %v51 = vld [vmem:[%s0 + $0x3c] sm:$0xf]
  %v52 = vld [vmem:[%s1] sm:$0xff]
  %v53 = vld [vmem:[%s1 + $0x8] sm:$0xff]
  %v54 = vld [vmem:[%s1 + $0x10] sm:$0xff]
  %v55 = vld [vmem:[%s1 + $0x18] sm:$0xff]
  %v56 = vld [vmem:[%s1 + $0x20] sm:$0xff]
  %v57 = vld [vmem:[%s1 + $0x28] sm:$0xff]
  %v58 = vld [vmem:[%s1 + $0x30] sm:$0xff]
  %v59 = vld [vmem:[%s1 + $0x38] sm:$0xff]
  %v60 = vld [vmem:[%s1 + $0x40] sm:$0xff]
  %v61 = vld [vmem:[%s1 + $0x48] sm:$0xff]
  %v62 = vld [vmem:[%s1 + $0x50] sm:$0xff]
  %v63 = vld [vmem:[%s1 + $0x58] sm:$0xff]
  %v64 = vld [vmem:[%s1 + $0x60] sm:$0xff]
  %v65 = vld [vmem:[%s1 + $0x68] sm:$0xff]
  %v66 = vld [vmem:[%s1 + $0x70] sm:$0xff]
  %v67 = vld [vmem:[%s1 + $0x78] sm:$0xff]
  %v68 = vld [vmem:[%s6] sm:$0xff]
  %v69 = vld [vmem:[%s6 + $0x8] sm:$0xff]
  %v70 = vld [vmem:[%s6 + $0x10] sm:$0xff]
  %v71 = vld [vmem:[%s6 + $0x18] sm:$0xff]
  %v72 = vld [vmem:[%s6 + $0x20] sm:$0xff]
  %v73 = vld [vmem:[%s6 + $0x28] sm:$0xff]
  %v74 = vld [vmem:[%s6 + $0x30] sm:$0xff]
  %v75 = vld [vmem:[%s6 + $0x38] sm:$0xff]
  %v76 = vld [vmem:[%s6 + $0x40] sm:$0xff]
  %v77 = vld [vmem:[%s6 + $0x48] sm:$0xff]
  %v78 = vld [vmem:[%s6 + $0x50] sm:$0xff]
  %v79 = vld [vmem:[%s6 + $0x58] sm:$0xff]
  %v80 = vld [vmem:[%s6 + $0x60] sm:$0xff]
  %v81 = vld [vmem:[%s6 + $0x68] sm:$0xff]
  %v82 = vld [vmem:[%s6 + $0x70] sm:$0xff]
  %v83 = vld [vmem:[%s6 + $0x78] sm:$0xff]
  %85 = vset.pattern.permute.xlu0 0
  %86 = vperm.xlu0 %85, %v68
  %v87 = vpop.permute.xlu0 %86
  %90 = vset.pattern.permute.xlu0 0
  %91 = vperm.xlu0 %90, %v69
  %v92 = vpop.permute.xlu0 %91
  %95 = vset.pattern.permute.xlu0 0
  %96 = vperm.xlu0 %95, %v70
  %v97 = vpop.permute.xlu0 %96
  %100 = vset.pattern.permute.xlu0 0
  %101 = vperm.xlu0 %100, %v71
  %v102 = vpop.permute.xlu0 %101
  %105 = vset.pattern.permute.xlu0 0
  %106 = vperm.xlu0 %105, %v72
  %v107 = vpop.permute.xlu0 %106
  %110 = vset.pattern.permute.xlu0 0
  %111 = vperm.xlu0 %110, %v73
  %v112 = vpop.permute.xlu0 %111
  %115 = vset.pattern.permute.xlu0 0
  %116 = vperm.xlu0 %115, %v74
  %v117 = vpop.permute.xlu0 %116
  %120 = vset.pattern.permute.xlu0 0
  %121 = vperm.xlu0 %120, %v75
  %v122 = vpop.permute.xlu0 %121
  %125 = vset.pattern.permute.xlu0 0
  %126 = vperm.xlu0 %125, %v76
  %v127 = vpop.permute.xlu0 %126
  %130 = vset.pattern.permute.xlu0 0
  %131 = vperm.xlu0 %130, %v77
  %v132 = vpop.permute.xlu0 %131
  %135 = vset.pattern.permute.xlu0 0
  %136 = vperm.xlu0 %135, %v78
  %v137 = vpop.permute.xlu0 %136
  %140 = vset.pattern.permute.xlu0 0
  %141 = vperm.xlu0 %140, %v79
  %v142 = vpop.permute.xlu0 %141
  %145 = vset.pattern.permute.xlu0 0
  %146 = vperm.xlu0 %145, %v80
  %v147 = vpop.permute.xlu0 %146
  %150 = vset.pattern.permute.xlu0 0
  %151 = vperm.xlu0 %150, %v81
  %v152 = vpop.permute.xlu0 %151
  %155 = vset.pattern.permute.xlu0 0
  %156 = vperm.xlu0 %155, %v82
  %v157 = vpop.permute.xlu0 %156
  %160 = vset.pattern.permute.xlu0 0
  %161 = vperm.xlu0 %160, %v83
  %v162 = vpop.permute.xlu0 %161
  %v164 = vmul.f32 %v52, %v87
  %v165 = vmul.f32 %v53, %v92
  %v166 = vmul.f32 %v54, %v97
  %v167 = vmul.f32 %v55, %v102
  %v168 = vmul.f32 %v56, %v107
  %v169 = vmul.f32 %v57, %v112
  %v170 = vmul.f32 %v58, %v117
  %v171 = vmul.f32 %v59, %v122
  %v172 = vmul.f32 %v60, %v127
  %v173 = vmul.f32 %v61, %v132
  %v174 = vmul.f32 %v62, %v137
  %v175 = vmul.f32 %v63, %v142
  %v176 = vmul.f32 %v64, %v147
  %v177 = vmul.f32 %v65, %v152
  %v178 = vmul.f32 %v66, %v157
  %v179 = vmul.f32 %v67, %v162
  %v180 = vpack.c.bf16 %v165, %v164
  %v181 = vpack.c.bf16 %v167, %v166
  %v182 = vpack.c.bf16 %v169, %v168
  %v183 = vpack.c.bf16 %v171, %v170
  %v184 = vpack.c.bf16 %v173, %v172
  %v185 = vpack.c.bf16 %v175, %v174
  %v186 = vpack.c.bf16 %v177, %v176
  %v187 = vpack.c.bf16 %v179, %v178
  %v204 = vunpack.c.l.b16 %v36
  %v205 = vunpack.c.l.b16 %v37
  %v206 = vunpack.c.l.b16 %v38
  %v207 = vunpack.c.l.b16 %v39
  %v208 = vunpack.c.l.b16 %v40
  %v209 = vunpack.c.l.b16 %v41
  %v210 = vunpack.c.l.b16 %v42
  %v211 = vunpack.c.l.b16 %v43
  %v212 = vunpack.c.l.b16 %v44
  %v213 = vunpack.c.l.b16 %v45
  %v214 = vunpack.c.l.b16 %v46
  %v215 = vunpack.c.l.b16 %v47
  %v216 = vunpack.c.l.b16 %v48
  %v217 = vunpack.c.l.b16 %v49
  %v218 = vunpack.c.l.b16 %v50
  %v219 = vunpack.c.l.b16 %v51
  %v220 = vpack.c.b16 %v205, %v204
  %v221 = vpack.c.b16 %v207, %v206
  %v222 = vpack.c.b16 %v209, %v208
  %v223 = vpack.c.b16 %v211, %v210
  %v224 = vpack.c.b16 %v213, %v212
  %v225 = vpack.c.b16 %v215, %v214
  %v226 = vpack.c.b16 %v217, %v216
  %v227 = vpack.c.b16 %v219, %v218
  %236 = vxpose.xlu0.c.b16.start [1/8] %v220, 128
  %237 = vxpose.xlu0.c.b16.cont [2/8] %v221, 128
  %238 = vxpose.xlu0.c.b16.cont [3/8] %v222, 128
  %239 = vxpose.xlu0.c.b16.cont [4/8] %v223, 128
  %240 = vxpose.xlu0.c.b16.cont [5/8] %v224, 128
  %241 = vxpose.xlu0.c.b16.cont [6/8] %v225, 128
  %242 = vxpose.xlu0.c.b16.cont [7/8] %v226, 128
  %243 = vxpose.xlu0.c.b16.end [8/8] %v227, 128
  %v244 = vpop.trf.xlu0
  %v245 = vpop.trf.xlu0
  %v246 = vpop.trf.xlu0
  %v247 = vpop.trf.xlu0
  %v248 = vpop.trf.xlu0
  %v249 = vpop.trf.xlu0
  %v250 = vpop.trf.xlu0
  %v251 = vpop.trf.xlu0
  %252 = vmatprep.subr.bf16.mxu0 0
  %253 = vmatpush1.bf16.msra.mxu0 %v187
  %254 = vmatprep.subr.bf16.mxu0 0
  %255 = vmatpush1.bf16.msra.mxu0 %v186
  %256 = vmatprep.subr.bf16.mxu0 0
  %257 = vmatpush1.bf16.msra.mxu0 %v185
  %258 = vmatprep.subr.bf16.mxu0 0
  %259 = vmatpush1.bf16.msra.mxu0 %v184
  %260 = vmatprep.subr.bf16.mxu0 0
  %261 = vmatpush1.bf16.msra.mxu0 %v183
  %262 = vmatprep.subr.bf16.mxu0 0
  %263 = vmatpush1.bf16.msra.mxu0 %v182
  %264 = vmatprep.subr.bf16.mxu0 0
  %265 = vmatpush1.bf16.msra.mxu0 %v181
  %266 = vmatprep.subr.bf16.mxu0 0
  %267 = vmatpush1.bf16.msra.mxu0 %v180
  %268 = vmatprep.subr.bf16.mxu0 0
  %269 = vmatpush2.bf16.msra.mxu0 0
  %270 = vmatprep.subr.bf16.mxu0 0
  %271 = vmatpush2.bf16.msra.mxu0 0
  %272 = vmatprep.subr.bf16.mxu0 0
  %273 = vmatpush2.bf16.msra.mxu0 0
  %274 = vmatprep.subr.bf16.mxu0 0
  %275 = vmatpush2.bf16.msra.mxu0 0
  %276 = vmatprep.subr.bf16.mxu0 0
  %277 = vmatpush2.bf16.msra.mxu0 0
  %278 = vmatprep.subr.bf16.mxu0 0
  %279 = vmatpush2.bf16.msra.mxu0 0
  %280 = vmatprep.subr.bf16.mxu0 0
  %281 = vmatpush2.bf16.msra.mxu0 0
  %282 = vmatprep.subr.bf16.mxu0 0
  %283 = vmatpush2.bf16.msra.mxu0 0
  %284 = vmatprep.mubr.bf16.mxu0 0
  %285 = vmatmul.mubr.bf16.gmra.mxu0 %v244
  %v286 = vpop.f32.mrf.mxu0
  %v287 = vadd.f32 0.0, %v286
  %v288 = vpop.f32.mrf.mxu0
  %v289 = vpop.f32.mrf.mxu0
  %v290 = vadd.f32 0.0, %v289
  %v291 = vpop.f32.mrf.mxu0
  %292 = vmatprep.mubr.bf16.mxu0 0
  %293 = vmatmul.mubr.bf16.gmra.mxu0 %v245
  %v294 = vpop.f32.mrf.mxu0
  %v295 = vadd.f32 0.0, %v294
  %v296 = vpop.f32.mrf.mxu0
  %v297 = vpop.f32.mrf.mxu0
  %v298 = vadd.f32 0.0, %v297
  %v299 = vpop.f32.mrf.mxu0
  %300 = vmatprep.mubr.bf16.mxu0 0
  %301 = vmatmul.mubr.bf16.gmra.mxu0 %v246
  %v302 = vpop.f32.mrf.mxu0
  %v303 = vadd.f32 0.0, %v302
  %v304 = vpop.f32.mrf.mxu0
  %v305 = vpop.f32.mrf.mxu0
  %v306 = vadd.f32 0.0, %v305
  %v307 = vpop.f32.mrf.mxu0
  %308 = vmatprep.mubr.bf16.mxu0 0
  %309 = vmatmul.mubr.bf16.gmra.mxu0 %v247
  %v310 = vpop.f32.mrf.mxu0
  %v311 = vadd.f32 0.0, %v310
  %v312 = vpop.f32.mrf.mxu0
  %v313 = vpop.f32.mrf.mxu0
  %v314 = vadd.f32 0.0, %v313
  %v315 = vpop.f32.mrf.mxu0
  %316 = vmatprep.mubr.bf16.mxu0 0
  %317 = vmatmul.mubr.bf16.gmra.mxu0 %v248
  %v318 = vpop.f32.mrf.mxu0
  %v319 = vadd.f32 0.0, %v318
  %v320 = vpop.f32.mrf.mxu0
  %v321 = vpop.f32.mrf.mxu0
  %v322 = vadd.f32 0.0, %v321
  %v323 = vpop.f32.mrf.mxu0
  %324 = vmatprep.mubr.bf16.mxu0 0
  %325 = vmatmul.mubr.bf16.gmra.mxu0 %v249
  %v326 = vpop.f32.mrf.mxu0
  %v327 = vadd.f32 0.0, %v326
  %v328 = vpop.f32.mrf.mxu0
  %v329 = vpop.f32.mrf.mxu0
  %v330 = vadd.f32 0.0, %v329
  %v331 = vpop.f32.mrf.mxu0
  %332 = vmatprep.mubr.bf16.mxu0 0
  %333 = vmatmul.mubr.bf16.gmra.mxu0 %v250
  %v334 = vpop.f32.mrf.mxu0
  %v335 = vadd.f32 0.0, %v334
  %v336 = vpop.f32.mrf.mxu0
  %v337 = vpop.f32.mrf.mxu0
  %v338 = vadd.f32 0.0, %v337
  %v339 = vpop.f32.mrf.mxu0
  %340 = vmatprep.mubr.bf16.mxu0 0
  %341 = vmatmul.mubr.bf16.gmra.mxu0 %v251
  %v342 = vpop.f32.mrf.mxu0
  %v343 = vadd.f32 0.0, %v342
  %v344 = vpop.f32.mrf.mxu0
  %v345 = vpop.f32.mrf.mxu0
  %v346 = vadd.f32 0.0, %v345
  %v347 = vpop.f32.mrf.mxu0
  %348 = vdwg.mxu0
  %v349 = vpack.c.bf16 %v290, %v287
  %v350 = vpack.c.bf16 %v298, %v295
  %v351 = vpack.c.bf16 %v306, %v303
  %v352 = vpack.c.bf16 %v314, %v311
  %v353 = vpack.c.bf16 %v322, %v319
  %v354 = vpack.c.bf16 %v330, %v327
  %v355 = vpack.c.bf16 %v338, %v335
  %v356 = vpack.c.bf16 %v346, %v343
  %v357 = vld [vmem:[%s2] sm:$0xf]
  %v358 = vld [vmem:[%s2 + $0x4] sm:$0xf]
  %v359 = vld [vmem:[%s2 + $0x8] sm:$0xf]
  %v360 = vld [vmem:[%s2 + $0xc] sm:$0xf]
  %v361 = vld [vmem:[%s2 + $0x10] sm:$0xf]
  %v362 = vld [vmem:[%s2 + $0x14] sm:$0xf]
  %v363 = vld [vmem:[%s2 + $0x18] sm:$0xf]
  %v364 = vld [vmem:[%s2 + $0x1c] sm:$0xf]
  %v365 = vld [vmem:[%s2 + $0x20] sm:$0xf]
  %v366 = vld [vmem:[%s2 + $0x24] sm:$0xf]
  %v367 = vld [vmem:[%s2 + $0x28] sm:$0xf]
  %v368 = vld [vmem:[%s2 + $0x2c] sm:$0xf]
  %v369 = vld [vmem:[%s2 + $0x30] sm:$0xf]
  %v370 = vld [vmem:[%s2 + $0x34] sm:$0xf]
  %v371 = vld [vmem:[%s2 + $0x38] sm:$0xf]
  %v372 = vld [vmem:[%s2 + $0x3c] sm:$0xf]
  %v389 = vunpack.c.l.b16 %v357
  %v390 = vunpack.c.l.b16 %v358
  %v391 = vunpack.c.l.b16 %v359
  %v392 = vunpack.c.l.b16 %v360
  %v393 = vunpack.c.l.b16 %v361
  %v394 = vunpack.c.l.b16 %v362
  %v395 = vunpack.c.l.b16 %v363
  %v396 = vunpack.c.l.b16 %v364
  %v397 = vunpack.c.l.b16 %v365
  %v398 = vunpack.c.l.b16 %v366
  %v399 = vunpack.c.l.b16 %v367
  %v400 = vunpack.c.l.b16 %v368
  %v401 = vunpack.c.l.b16 %v369
  %v402 = vunpack.c.l.b16 %v370
  %v403 = vunpack.c.l.b16 %v371
  %v404 = vunpack.c.l.b16 %v372
  %v405 = vpack.c.b16 %v390, %v389
  %v406 = vpack.c.b16 %v392, %v391
  %v407 = vpack.c.b16 %v394, %v393
  %v408 = vpack.c.b16 %v396, %v395
  %v409 = vpack.c.b16 %v398, %v397
  %v410 = vpack.c.b16 %v400, %v399
  %v411 = vpack.c.b16 %v402, %v401
  %v412 = vpack.c.b16 %v404, %v403
  %421 = vmatprep.subr.bf16.mxu0 0
  %422 = vmatpush1.bf16.msra.mxu0 %v412
  %423 = vmatprep.subr.bf16.mxu0 0
  %424 = vmatpush1.bf16.msra.mxu0 %v411
  %425 = vmatprep.subr.bf16.mxu0 0
  %426 = vmatpush1.bf16.msra.mxu0 %v410
  %427 = vmatprep.subr.bf16.mxu0 0
  %428 = vmatpush1.bf16.msra.mxu0 %v409
  %429 = vmatprep.subr.bf16.mxu0 0
  %430 = vmatpush1.bf16.msra.mxu0 %v408
  %431 = vmatprep.subr.bf16.mxu0 0
  %432 = vmatpush1.bf16.msra.mxu0 %v407
  %433 = vmatprep.subr.bf16.mxu0 0
  %434 = vmatpush1.bf16.msra.mxu0 %v406
  %435 = vmatprep.subr.bf16.mxu0 0
  %436 = vmatpush1.bf16.msra.mxu0 %v405
  %437 = vmatprep.subr.bf16.mxu0 0
  %438 = vmatpush2.bf16.msra.mxu0 0
  %439 = vmatprep.subr.bf16.mxu0 0
  %440 = vmatpush2.bf16.msra.mxu0 0
  %441 = vmatprep.subr.bf16.mxu0 0
  %442 = vmatpush2.bf16.msra.mxu0 0
  %443 = vmatprep.subr.bf16.mxu0 0
  %444 = vmatpush2.bf16.msra.mxu0 0
  %445 = vmatprep.subr.bf16.mxu0 0
  %446 = vmatpush2.bf16.msra.mxu0 0
  %447 = vmatprep.subr.bf16.mxu0 0
  %448 = vmatpush2.bf16.msra.mxu0 0
  %449 = vmatprep.subr.bf16.mxu0 0
  %450 = vmatpush2.bf16.msra.mxu0 0
  %451 = vmatprep.subr.bf16.mxu0 0
  %452 = vmatpush2.bf16.msra.mxu0 0
  %453 = vmatprep.mubr.bf16.mxu0 0
  %454 = vmatmul.mubr.bf16.gmra.mxu0 %v349
  %v455 = vpop.f32.mrf.mxu0
  %v456 = vadd.f32 0.0, %v455
  %v457 = vpop.f32.mrf.mxu0
  %v458 = vpop.f32.mrf.mxu0
  %v459 = vadd.f32 0.0, %v458
  %v460 = vpop.f32.mrf.mxu0
  %461 = vmatprep.mubr.bf16.mxu0 0
  %462 = vmatmul.mubr.bf16.gmra.mxu0 %v350
  %v463 = vpop.f32.mrf.mxu0
  %v464 = vadd.f32 0.0, %v463
  %v465 = vpop.f32.mrf.mxu0
  %v466 = vpop.f32.mrf.mxu0
  %v467 = vadd.f32 0.0, %v466
  %v468 = vpop.f32.mrf.mxu0
  %469 = vmatprep.mubr.bf16.mxu0 0
  %470 = vmatmul.mubr.bf16.gmra.mxu0 %v351
  %v471 = vpop.f32.mrf.mxu0
  %v472 = vadd.f32 0.0, %v471
  %v473 = vpop.f32.mrf.mxu0
  %v474 = vpop.f32.mrf.mxu0
  %v475 = vadd.f32 0.0, %v474
  %v476 = vpop.f32.mrf.mxu0
  %477 = vmatprep.mubr.bf16.mxu0 0
  %478 = vmatmul.mubr.bf16.gmra.mxu0 %v352
  %v479 = vpop.f32.mrf.mxu0
  %v480 = vadd.f32 0.0, %v479
  %v481 = vpop.f32.mrf.mxu0
  %v482 = vpop.f32.mrf.mxu0
  %v483 = vadd.f32 0.0, %v482
  %v484 = vpop.f32.mrf.mxu0
  %485 = vmatprep.mubr.bf16.mxu0 0
  %486 = vmatmul.mubr.bf16.gmra.mxu0 %v353
  %v487 = vpop.f32.mrf.mxu0
  %v488 = vadd.f32 0.0, %v487
  %v489 = vpop.f32.mrf.mxu0
  %v490 = vpop.f32.mrf.mxu0
  %v491 = vadd.f32 0.0, %v490
  %v492 = vpop.f32.mrf.mxu0
  %493 = vmatprep.mubr.bf16.mxu0 0
  %494 = vmatmul.mubr.bf16.gmra.mxu0 %v354
  %v495 = vpop.f32.mrf.mxu0
  %v496 = vadd.f32 0.0, %v495
  %v497 = vpop.f32.mrf.mxu0
  %v498 = vpop.f32.mrf.mxu0
  %v499 = vadd.f32 0.0, %v498
  %v500 = vpop.f32.mrf.mxu0
  %501 = vmatprep.mubr.bf16.mxu0 0
  %502 = vmatmul.mubr.bf16.gmra.mxu0 %v355
  %v503 = vpop.f32.mrf.mxu0
  %v504 = vadd.f32 0.0, %v503
  %v505 = vpop.f32.mrf.mxu0
  %v506 = vpop.f32.mrf.mxu0
  %v507 = vadd.f32 0.0, %v506
  %v508 = vpop.f32.mrf.mxu0
  %509 = vmatprep.mubr.bf16.mxu0 0
  %510 = vmatmul.mubr.bf16.gmra.mxu0 %v356
  %v511 = vpop.f32.mrf.mxu0
  %v512 = vadd.f32 0.0, %v511
  %v513 = vpop.f32.mrf.mxu0
  %v514 = vpop.f32.mrf.mxu0
  %v515 = vadd.f32 0.0, %v514
  %v516 = vpop.f32.mrf.mxu0
  %517 = vdwg.mxu0
  %v518 = vld [vmem:[%s7] sm:$0xff]
  %v519 = vld [vmem:[%s7 + $0x8] sm:$0xff]
  %v520 = vld [vmem:[%s7 + $0x10] sm:$0xff]
  %v521 = vld [vmem:[%s7 + $0x18] sm:$0xff]
  %v522 = vld [vmem:[%s7 + $0x20] sm:$0xff]
  %v523 = vld [vmem:[%s7 + $0x28] sm:$0xff]
  %v524 = vld [vmem:[%s7 + $0x30] sm:$0xff]
  %v525 = vld [vmem:[%s7 + $0x38] sm:$0xff]
  %v526 = vld [vmem:[%s7 + $0x40] sm:$0xff]
  %v527 = vld [vmem:[%s7 + $0x48] sm:$0xff]
  %v528 = vld [vmem:[%s7 + $0x50] sm:$0xff]
  %v529 = vld [vmem:[%s7 + $0x58] sm:$0xff]
  %v530 = vld [vmem:[%s7 + $0x60] sm:$0xff]
  %v531 = vld [vmem:[%s7 + $0x68] sm:$0xff]
  %v532 = vld [vmem:[%s7 + $0x70] sm:$0xff]
  %v533 = vld [vmem:[%s7 + $0x78] sm:$0xff]
  %535 = vset.pattern.permute.xlu0 0
  %536 = vperm.xlu0 %535, %v518
  %v537 = vpop.permute.xlu0 %536
  %540 = vset.pattern.permute.xlu0 0
  %541 = vperm.xlu0 %540, %v519
  %v542 = vpop.permute.xlu0 %541
  %545 = vset.pattern.permute.xlu0 0
  %546 = vperm.xlu0 %545, %v520
  %v547 = vpop.permute.xlu0 %546
  %550 = vset.pattern.permute.xlu0 0
  %551 = vperm.xlu0 %550, %v521
  %v552 = vpop.permute.xlu0 %551
  %555 = vset.pattern.permute.xlu0 0
  %556 = vperm.xlu0 %555, %v522
  %v557 = vpop.permute.xlu0 %556
  %560 = vset.pattern.permute.xlu0 0
  %561 = vperm.xlu0 %560, %v523
  %v562 = vpop.permute.xlu0 %561
  %565 = vset.pattern.permute.xlu0 0
  %566 = vperm.xlu0 %565, %v524
  %v567 = vpop.permute.xlu0 %566
  %570 = vset.pattern.permute.xlu0 0
  %571 = vperm.xlu0 %570, %v525
  %v572 = vpop.permute.xlu0 %571
  %575 = vset.pattern.permute.xlu0 0
  %576 = vperm.xlu0 %575, %v526
  %v577 = vpop.permute.xlu0 %576
  %580 = vset.pattern.permute.xlu0 0
  %581 = vperm.xlu0 %580, %v527
  %v582 = vpop.permute.xlu0 %581
  %585 = vset.pattern.permute.xlu0 0
  %586 = vperm.xlu0 %585, %v528
  %v587 = vpop.permute.xlu0 %586
  %590 = vset.pattern.permute.xlu0 0
  %591 = vperm.xlu0 %590, %v529
  %v592 = vpop.permute.xlu0 %591
  %595 = vset.pattern.permute.xlu0 0
  %596 = vperm.xlu0 %595, %v530
  %v597 = vpop.permute.xlu0 %596
  %600 = vset.pattern.permute.xlu0 0
  %601 = vperm.xlu0 %600, %v531
  %v602 = vpop.permute.xlu0 %601
  %605 = vset.pattern.permute.xlu0 0
  %606 = vperm.xlu0 %605, %v532
  %v607 = vpop.permute.xlu0 %606
  %610 = vset.pattern.permute.xlu0 0
  %611 = vperm.xlu0 %610, %v533
  %v612 = vpop.permute.xlu0 %611
  %v614 = vmul.f32 %v456, %v537
  %v615 = vmul.f32 %v459, %v542
  %v616 = vmul.f32 %v464, %v547
  %v617 = vmul.f32 %v467, %v552
  %v618 = vmul.f32 %v472, %v557
  %v619 = vmul.f32 %v475, %v562
  %v620 = vmul.f32 %v480, %v567
  %v621 = vmul.f32 %v483, %v572
  %v622 = vmul.f32 %v488, %v577
  %v623 = vmul.f32 %v491, %v582
  %v624 = vmul.f32 %v496, %v587
  %v625 = vmul.f32 %v499, %v592
  %v626 = vmul.f32 %v504, %v597
  %v627 = vmul.f32 %v507, %v602
  %v628 = vmul.f32 %v512, %v607
  %v629 = vmul.f32 %v515, %v612
  %v630 = vld [vmem:[%s3] sm:$0x1]
  %v632 = vlaneseq
  %v633 = vshrl.u32 %v632, 7
  %v634 = vsub.s32 0, %v633
  %v635 = vrot.slane %v630, %v634
  %v637 = vadd.f32 %v614, %v635
  %v638 = vadd.f32 %v615, %v635
  %v639 = vadd.f32 %v616, %v635
  %v640 = vadd.f32 %v617, %v635
  %v641 = vadd.f32 %v618, %v635
  %v642 = vadd.f32 %v619, %v635
  %v643 = vadd.f32 %v620, %v635
  %v644 = vadd.f32 %v621, %v635
  %v645 = vadd.f32 %v622, %v635
  %v646 = vadd.f32 %v623, %v635
  %v647 = vadd.f32 %v624, %v635
  %v648 = vadd.f32 %v625, %v635
  %v649 = vadd.f32 %v626, %v635
  %v650 = vadd.f32 %v627, %v635
  %v651 = vadd.f32 %v628, %v635
  %v652 = vadd.f32 %v629, %v635
  %v653 = vmax.f32 %v637, 0.0
  %v654 = vmax.f32 %v638, 0.0
  %v655 = vmax.f32 %v639, 0.0
  %v656 = vmax.f32 %v640, 0.0
  %v657 = vmax.f32 %v641, 0.0
  %v658 = vmax.f32 %v642, 0.0
  %v659 = vmax.f32 %v643, 0.0
  %v660 = vmax.f32 %v644, 0.0
  %v661 = vmax.f32 %v645, 0.0
  %v662 = vmax.f32 %v646, 0.0
  %v663 = vmax.f32 %v647, 0.0
  %v664 = vmax.f32 %v648, 0.0
  %v665 = vmax.f32 %v649, 0.0
  %v666 = vmax.f32 %v650, 0.0
  %v667 = vmax.f32 %v651, 0.0
  %v668 = vmax.f32 %v652, 0.0
  %v669 = vld [vmem:[%s8] sm:$0xff]
  %v670 = vld [vmem:[%s8 + $0x8] sm:$0xff]
  %v671 = vld [vmem:[%s8 + $0x10] sm:$0xff]
  %v672 = vld [vmem:[%s8 + $0x18] sm:$0xff]
  %v673 = vld [vmem:[%s8 + $0x20] sm:$0xff]
  %v674 = vld [vmem:[%s8 + $0x28] sm:$0xff]
  %v675 = vld [vmem:[%s8 + $0x30] sm:$0xff]
  %v676 = vld [vmem:[%s8 + $0x38] sm:$0xff]
  %v677 = vld [vmem:[%s8 + $0x40] sm:$0xff]
  %v678 = vld [vmem:[%s8 + $0x48] sm:$0xff]
  %v679 = vld [vmem:[%s8 + $0x50] sm:$0xff]
  %v680 = vld [vmem:[%s8 + $0x58] sm:$0xff]
  %v681 = vld [vmem:[%s8 + $0x60] sm:$0xff]
  %v682 = vld [vmem:[%s8 + $0x68] sm:$0xff]
  %v683 = vld [vmem:[%s8 + $0x70] sm:$0xff]
  %v684 = vld [vmem:[%s8 + $0x78] sm:$0xff]
  %686 = vset.pattern.permute.xlu0 0
  %687 = vperm.xlu0 %686, %v669
  %v688 = vpop.permute.xlu0 %687
  %691 = vset.pattern.permute.xlu0 0
  %692 = vperm.xlu0 %691, %v670
  %v693 = vpop.permute.xlu0 %692
  %696 = vset.pattern.permute.xlu0 0
  %697 = vperm.xlu0 %696, %v671
  %v698 = vpop.permute.xlu0 %697
  %701 = vset.pattern.permute.xlu0 0
  %702 = vperm.xlu0 %701, %v672
  %v703 = vpop.permute.xlu0 %702
  %706 = vset.pattern.permute.xlu0 0
  %707 = vperm.xlu0 %706, %v673
  %v708 = vpop.permute.xlu0 %707
  %711 = vset.pattern.permute.xlu0 0
  %712 = vperm.xlu0 %711, %v674
  %v713 = vpop.permute.xlu0 %712
  %716 = vset.pattern.permute.xlu0 0
  %717 = vperm.xlu0 %716, %v675
  %v718 = vpop.permute.xlu0 %717
  %721 = vset.pattern.permute.xlu0 0
  %722 = vperm.xlu0 %721, %v676
  %v723 = vpop.permute.xlu0 %722
  %726 = vset.pattern.permute.xlu0 0
  %727 = vperm.xlu0 %726, %v677
  %v728 = vpop.permute.xlu0 %727
  %731 = vset.pattern.permute.xlu0 0
  %732 = vperm.xlu0 %731, %v678
  %v733 = vpop.permute.xlu0 %732
  %736 = vset.pattern.permute.xlu0 0
  %737 = vperm.xlu0 %736, %v679
  %v738 = vpop.permute.xlu0 %737
  %741 = vset.pattern.permute.xlu0 0
  %742 = vperm.xlu0 %741, %v680
  %v743 = vpop.permute.xlu0 %742
  %746 = vset.pattern.permute.xlu0 0
  %747 = vperm.xlu0 %746, %v681
  %v748 = vpop.permute.xlu0 %747
  %751 = vset.pattern.permute.xlu0 0
  %752 = vperm.xlu0 %751, %v682
  %v753 = vpop.permute.xlu0 %752
  %756 = vset.pattern.permute.xlu0 0
  %757 = vperm.xlu0 %756, %v683
  %v758 = vpop.permute.xlu0 %757
  %761 = vset.pattern.permute.xlu0 0
  %762 = vperm.xlu0 %761, %v684
  %v763 = vpop.permute.xlu0 %762
  %v765 = vmul.f32 %v653, %v688
  %v766 = vmul.f32 %v654, %v693
  %v767 = vmul.f32 %v655, %v698
  %v768 = vmul.f32 %v656, %v703
  %v769 = vmul.f32 %v657, %v708
  %v770 = vmul.f32 %v658, %v713
  %v771 = vmul.f32 %v659, %v718
  %v772 = vmul.f32 %v660, %v723
  %v773 = vmul.f32 %v661, %v728
  %v774 = vmul.f32 %v662, %v733
  %v775 = vmul.f32 %v663, %v738
  %v776 = vmul.f32 %v664, %v743
  %v777 = vmul.f32 %v665, %v748
  %v778 = vmul.f32 %v666, %v753
  %v779 = vmul.f32 %v667, %v758
  %v780 = vmul.f32 %v668, %v763
  %v781 = vpack.c.bf16 %v766, %v765
  %v782 = vpack.c.bf16 %v768, %v767
  %v783 = vpack.c.bf16 %v770, %v769
  %v784 = vpack.c.bf16 %v772, %v771
  %v785 = vpack.c.bf16 %v774, %v773
  %v786 = vpack.c.bf16 %v776, %v775
  %v787 = vpack.c.bf16 %v778, %v777
  %v788 = vpack.c.bf16 %v780, %v779
  %v789 = vld [vmem:[%s4] sm:$0xf]
  %v790 = vld [vmem:[%s4 + $0x4] sm:$0xf]
  %v791 = vld [vmem:[%s4 + $0x8] sm:$0xf]
  %v792 = vld [vmem:[%s4 + $0xc] sm:$0xf]
  %v793 = vld [vmem:[%s4 + $0x10] sm:$0xf]
  %v794 = vld [vmem:[%s4 + $0x14] sm:$0xf]
  %v795 = vld [vmem:[%s4 + $0x18] sm:$0xf]
  %v796 = vld [vmem:[%s4 + $0x1c] sm:$0xf]
  %v797 = vld [vmem:[%s4 + $0x20] sm:$0xf]
  %v798 = vld [vmem:[%s4 + $0x24] sm:$0xf]
  %v799 = vld [vmem:[%s4 + $0x28] sm:$0xf]
  %v800 = vld [vmem:[%s4 + $0x2c] sm:$0xf]
  %v801 = vld [vmem:[%s4 + $0x30] sm:$0xf]
  %v802 = vld [vmem:[%s4 + $0x34] sm:$0xf]
  %v803 = vld [vmem:[%s4 + $0x38] sm:$0xf]
  %v804 = vld [vmem:[%s4 + $0x3c] sm:$0xf]
  %v821 = vunpack.c.l.b16 %v789
  %v822 = vunpack.c.l.b16 %v790
  %v823 = vunpack.c.l.b16 %v791
  %v824 = vunpack.c.l.b16 %v792
  %v825 = vunpack.c.l.b16 %v793
  %v826 = vunpack.c.l.b16 %v794
  %v827 = vunpack.c.l.b16 %v795
  %v828 = vunpack.c.l.b16 %v796
  %v829 = vunpack.c.l.b16 %v797
  %v830 = vunpack.c.l.b16 %v798
  %v831 = vunpack.c.l.b16 %v799
  %v832 = vunpack.c.l.b16 %v800
  %v833 = vunpack.c.l.b16 %v801
  %v834 = vunpack.c.l.b16 %v802
  %v835 = vunpack.c.l.b16 %v803
  %v836 = vunpack.c.l.b16 %v804
  %v837 = vpack.c.b16 %v822, %v821
  %v838 = vpack.c.b16 %v824, %v823
  %v839 = vpack.c.b16 %v826, %v825
  %v840 = vpack.c.b16 %v828, %v827
  %v841 = vpack.c.b16 %v830, %v829
  %v842 = vpack.c.b16 %v832, %v831
  %v843 = vpack.c.b16 %v834, %v833
  %v844 = vpack.c.b16 %v836, %v835
  %853 = vmatprep.subr.bf16.mxu0 0
  %854 = vmatpush1.bf16.msra.mxu0 %v844
  %855 = vmatprep.subr.bf16.mxu0 0
  %856 = vmatpush1.bf16.msra.mxu0 %v843
  %857 = vmatprep.subr.bf16.mxu0 0
  %858 = vmatpush1.bf16.msra.mxu0 %v842
  %859 = vmatprep.subr.bf16.mxu0 0
  %860 = vmatpush1.bf16.msra.mxu0 %v841
  %861 = vmatprep.subr.bf16.mxu0 0
  %862 = vmatpush1.bf16.msra.mxu0 %v840
  %863 = vmatprep.subr.bf16.mxu0 0
  %864 = vmatpush1.bf16.msra.mxu0 %v839
  %865 = vmatprep.subr.bf16.mxu0 0
  %866 = vmatpush1.bf16.msra.mxu0 %v838
  %867 = vmatprep.subr.bf16.mxu0 0
  %868 = vmatpush1.bf16.msra.mxu0 %v837
  %869 = vmatprep.subr.bf16.mxu0 0
  %870 = vmatpush2.bf16.msra.mxu0 0
  %871 = vmatprep.subr.bf16.mxu0 0
  %872 = vmatpush2.bf16.msra.mxu0 0
  %873 = vmatprep.subr.bf16.mxu0 0
  %874 = vmatpush2.bf16.msra.mxu0 0
  %875 = vmatprep.subr.bf16.mxu0 0
  %876 = vmatpush2.bf16.msra.mxu0 0
  %877 = vmatprep.subr.bf16.mxu0 0
  %878 = vmatpush2.bf16.msra.mxu0 0
  %879 = vmatprep.subr.bf16.mxu0 0
  %880 = vmatpush2.bf16.msra.mxu0 0
  %881 = vmatprep.subr.bf16.mxu0 0
  %882 = vmatpush2.bf16.msra.mxu0 0
  %883 = vmatprep.subr.bf16.mxu0 0
  %884 = vmatpush2.bf16.msra.mxu0 0
  %885 = vmatprep.mubr.bf16.mxu0 0
  %886 = vmatmul.mubr.bf16.gmra.mxu0 %v781
  %v887 = vpop.f32.mrf.mxu0
  %v888 = vadd.f32 0.0, %v887
  %v889 = vpop.f32.mrf.mxu0
  %v890 = vpop.f32.mrf.mxu0
  %v891 = vadd.f32 0.0, %v890
  %v892 = vpop.f32.mrf.mxu0
  %893 = vmatprep.mubr.bf16.mxu0 0
  %894 = vmatmul.mubr.bf16.gmra.mxu0 %v782
  %v895 = vpop.f32.mrf.mxu0
  %v896 = vadd.f32 0.0, %v895
  %v897 = vpop.f32.mrf.mxu0
  %v898 = vpop.f32.mrf.mxu0
  %v899 = vadd.f32 0.0, %v898
  %v900 = vpop.f32.mrf.mxu0
  %901 = vmatprep.mubr.bf16.mxu0 0
  %902 = vmatmul.mubr.bf16.gmra.mxu0 %v783
  %v903 = vpop.f32.mrf.mxu0
  %v904 = vadd.f32 0.0, %v903
  %v905 = vpop.f32.mrf.mxu0
  %v906 = vpop.f32.mrf.mxu0
  %v907 = vadd.f32 0.0, %v906
  %v908 = vpop.f32.mrf.mxu0
  %909 = vmatprep.mubr.bf16.mxu0 0
  %910 = vmatmul.mubr.bf16.gmra.mxu0 %v784
  %v911 = vpop.f32.mrf.mxu0
  %v912 = vadd.f32 0.0, %v911
  %v913 = vpop.f32.mrf.mxu0
  %v914 = vpop.f32.mrf.mxu0
  %v915 = vadd.f32 0.0, %v914
  %v916 = vpop.f32.mrf.mxu0
  %917 = vmatprep.mubr.bf16.mxu0 0
  %918 = vmatmul.mubr.bf16.gmra.mxu0 %v785
  %v919 = vpop.f32.mrf.mxu0
  %v920 = vadd.f32 0.0, %v919
  %v921 = vpop.f32.mrf.mxu0
  %v922 = vpop.f32.mrf.mxu0
  %v923 = vadd.f32 0.0, %v922
  %v924 = vpop.f32.mrf.mxu0
  %925 = vmatprep.mubr.bf16.mxu0 0
  %926 = vmatmul.mubr.bf16.gmra.mxu0 %v786
  %v927 = vpop.f32.mrf.mxu0
  %v928 = vadd.f32 0.0, %v927
  %v929 = vpop.f32.mrf.mxu0
  %v930 = vpop.f32.mrf.mxu0
  %v931 = vadd.f32 0.0, %v930
  %v932 = vpop.f32.mrf.mxu0
  %933 = vmatprep.mubr.bf16.mxu0 0
  %934 = vmatmul.mubr.bf16.gmra.mxu0 %v787
  %v935 = vpop.f32.mrf.mxu0
  %v936 = vadd.f32 0.0, %v935
  %v937 = vpop.f32.mrf.mxu0
  %v938 = vpop.f32.mrf.mxu0
  %v939 = vadd.f32 0.0, %v938
  %v940 = vpop.f32.mrf.mxu0
  %941 = vmatprep.mubr.bf16.mxu0 0
  %942 = vmatmul.mubr.bf16.gmra.mxu0 %v788
  %v943 = vpop.f32.mrf.mxu0
  %v944 = vadd.f32 0.0, %v943
  %v945 = vpop.f32.mrf.mxu0
  %v946 = vpop.f32.mrf.mxu0
  %v947 = vadd.f32 0.0, %v946
  %v948 = vpop.f32.mrf.mxu0
  %949 = vdwg.mxu0
  %v950 = vpack.c.bf16 %v891, %v888
  %v951 = vpack.c.bf16 %v899, %v896
  %v952 = vpack.c.bf16 %v907, %v904
  %v953 = vpack.c.bf16 %v915, %v912
  %v954 = vpack.c.bf16 %v923, %v920
  %v955 = vpack.c.bf16 %v931, %v928
  %v956 = vpack.c.bf16 %v939, %v936
  %v957 = vpack.c.bf16 %v947, %v944
  %958 = vmatprep.subr.bf16.mxu0 0
  %959 = vmatpush1.bf16.msra.mxu0 %v957
  %960 = vmatprep.subr.bf16.mxu0 0
  %961 = vmatpush1.bf16.msra.mxu0 %v956
  %962 = vmatprep.subr.bf16.mxu0 0
  %963 = vmatpush1.bf16.msra.mxu0 %v955
  %964 = vmatprep.subr.bf16.mxu0 0
  %965 = vmatpush1.bf16.msra.mxu0 %v954
  %966 = vmatprep.subr.bf16.mxu0 0
  %967 = vmatpush1.bf16.msra.mxu0 %v953
  %968 = vmatprep.subr.bf16.mxu0 0
  %969 = vmatpush1.bf16.msra.mxu0 %v952
  %970 = vmatprep.subr.bf16.mxu0 0
  %971 = vmatpush1.bf16.msra.mxu0 %v951
  %972 = vmatprep.subr.bf16.mxu0 0
  %973 = vmatpush1.bf16.msra.mxu0 %v950
  %974 = vmatprep.subr.bf16.mxu0 0
  %975 = vmatpush2.bf16.msra.mxu0 0
  %976 = vmatprep.subr.bf16.mxu0 0
  %977 = vmatpush2.bf16.msra.mxu0 0
  %978 = vmatprep.subr.bf16.mxu0 0
  %979 = vmatpush2.bf16.msra.mxu0 0
  %980 = vmatprep.subr.bf16.mxu0 0
  %981 = vmatpush2.bf16.msra.mxu0 0
  %982 = vmatprep.subr.bf16.mxu0 0
  %983 = vmatpush2.bf16.msra.mxu0 0
  %984 = vmatprep.subr.bf16.mxu0 0
  %985 = vmatpush2.bf16.msra.mxu0 0
  %986 = vmatprep.subr.bf16.mxu0 0
  %987 = vmatpush2.bf16.msra.mxu0 0
  %988 = vmatprep.subr.bf16.mxu0 0
  %989 = vmatpush2.bf16.msra.mxu0 0
  %990 = vmatprep.mubr.bf16.mxu0 0
  %991 = vmatmul.mubr.bf16.gmra.mxu0 %v220
  %v992 = vpop.f32.mrf.mxu0
  %v993 = vadd.f32 0.0, %v992
  %v994 = vpop.f32.mrf.mxu0
  %v995 = vpop.f32.mrf.mxu0
  %v996 = vadd.f32 0.0, %v995
  %v997 = vpop.f32.mrf.mxu0
  %998 = vmatprep.mubr.bf16.mxu0 0
  %999 = vmatmul.mubr.bf16.gmra.mxu0 %v221
  %v1000 = vpop.f32.mrf.mxu0
  %v1001 = vadd.f32 0.0, %v1000
  %v1002 = vpop.f32.mrf.mxu0
  %v1003 = vpop.f32.mrf.mxu0
  %v1004 = vadd.f32 0.0, %v1003
  %v1005 = vpop.f32.mrf.mxu0
  %1006 = vmatprep.mubr.bf16.mxu0 0
  %1007 = vmatmul.mubr.bf16.gmra.mxu0 %v222
  %v1008 = vpop.f32.mrf.mxu0
  %v1009 = vadd.f32 0.0, %v1008
  %v1010 = vpop.f32.mrf.mxu0
  %v1011 = vpop.f32.mrf.mxu0
  %v1012 = vadd.f32 0.0, %v1011
  %v1013 = vpop.f32.mrf.mxu0
  %1014 = vmatprep.mubr.bf16.mxu0 0
  %1015 = vmatmul.mubr.bf16.gmra.mxu0 %v223
  %v1016 = vpop.f32.mrf.mxu0
  %v1017 = vadd.f32 0.0, %v1016
  %v1018 = vpop.f32.mrf.mxu0
  %v1019 = vpop.f32.mrf.mxu0
  %v1020 = vadd.f32 0.0, %v1019
  %v1021 = vpop.f32.mrf.mxu0
  %1022 = vmatprep.mubr.bf16.mxu0 0
  %1023 = vmatmul.mubr.bf16.gmra.mxu0 %v224
  %v1024 = vpop.f32.mrf.mxu0
  %v1025 = vadd.f32 0.0, %v1024
  %v1026 = vpop.f32.mrf.mxu0
  %v1027 = vpop.f32.mrf.mxu0
  %v1028 = vadd.f32 0.0, %v1027
  %v1029 = vpop.f32.mrf.mxu0
  %1030 = vmatprep.mubr.bf16.mxu0 0
  %1031 = vmatmul.mubr.bf16.gmra.mxu0 %v225
  %v1032 = vpop.f32.mrf.mxu0
  %v1033 = vadd.f32 0.0, %v1032
  %v1034 = vpop.f32.mrf.mxu0
  %v1035 = vpop.f32.mrf.mxu0
  %v1036 = vadd.f32 0.0, %v1035
  %v1037 = vpop.f32.mrf.mxu0
  %1038 = vmatprep.mubr.bf16.mxu0 0
  %1039 = vmatmul.mubr.bf16.gmra.mxu0 %v226
  %v1040 = vpop.f32.mrf.mxu0
  %v1041 = vadd.f32 0.0, %v1040
  %v1042 = vpop.f32.mrf.mxu0
  %v1043 = vpop.f32.mrf.mxu0
  %v1044 = vadd.f32 0.0, %v1043
  %v1045 = vpop.f32.mrf.mxu0
  %1046 = vmatprep.mubr.bf16.mxu0 0
  %1047 = vmatmul.mubr.bf16.gmra.mxu0 %v227
  %v1048 = vpop.f32.mrf.mxu0
  %v1049 = vadd.f32 0.0, %v1048
  %v1050 = vpop.f32.mrf.mxu0
  %v1051 = vpop.f32.mrf.mxu0
  %v1052 = vadd.f32 0.0, %v1051
  %v1053 = vpop.f32.mrf.mxu0
  %1054 = vdwg.mxu0
  %v1055 = vld [vmem:[%s9] sm:$0xff]
  %v1056 = vld [vmem:[%s9 + $0x8] sm:$0xff]
  %v1057 = vld [vmem:[%s9 + $0x10] sm:$0xff]
  %v1058 = vld [vmem:[%s9 + $0x18] sm:$0xff]
  %v1059 = vld [vmem:[%s9 + $0x20] sm:$0xff]
  %v1060 = vld [vmem:[%s9 + $0x28] sm:$0xff]
  %v1061 = vld [vmem:[%s9 + $0x30] sm:$0xff]
  %v1062 = vld [vmem:[%s9 + $0x38] sm:$0xff]
  %v1063 = vld [vmem:[%s9 + $0x40] sm:$0xff]
  %v1064 = vld [vmem:[%s9 + $0x48] sm:$0xff]
  %v1065 = vld [vmem:[%s9 + $0x50] sm:$0xff]
  %v1066 = vld [vmem:[%s9 + $0x58] sm:$0xff]
  %v1067 = vld [vmem:[%s9 + $0x60] sm:$0xff]
  %v1068 = vld [vmem:[%s9 + $0x68] sm:$0xff]
  %v1069 = vld [vmem:[%s9 + $0x70] sm:$0xff]
  %v1070 = vld [vmem:[%s9 + $0x78] sm:$0xff]
  %1072 = vset.pattern.permute.xlu0 0
  %1073 = vperm.xlu0 %1072, %v1055
  %v1074 = vpop.permute.xlu0 %1073
  %1077 = vset.pattern.permute.xlu0 0
  %1078 = vperm.xlu0 %1077, %v1056
  %v1079 = vpop.permute.xlu0 %1078
  %1082 = vset.pattern.permute.xlu0 0
  %1083 = vperm.xlu0 %1082, %v1057
  %v1084 = vpop.permute.xlu0 %1083
  %1087 = vset.pattern.permute.xlu0 0
  %1088 = vperm.xlu0 %1087, %v1058
  %v1089 = vpop.permute.xlu0 %1088
  %1092 = vset.pattern.permute.xlu0 0
  %1093 = vperm.xlu0 %1092, %v1059
  %v1094 = vpop.permute.xlu0 %1093
  %1097 = vset.pattern.permute.xlu0 0
  %1098 = vperm.xlu0 %1097, %v1060
  %v1099 = vpop.permute.xlu0 %1098
  %1102 = vset.pattern.permute.xlu0 0
  %1103 = vperm.xlu0 %1102, %v1061
  %v1104 = vpop.permute.xlu0 %1103
  %1107 = vset.pattern.permute.xlu0 0
  %1108 = vperm.xlu0 %1107, %v1062
  %v1109 = vpop.permute.xlu0 %1108
  %1112 = vset.pattern.permute.xlu0 0
  %1113 = vperm.xlu0 %1112, %v1063
  %v1114 = vpop.permute.xlu0 %1113
  %1117 = vset.pattern.permute.xlu0 0
  %1118 = vperm.xlu0 %1117, %v1064
  %v1119 = vpop.permute.xlu0 %1118
  %1122 = vset.pattern.permute.xlu0 0
  %1123 = vperm.xlu0 %1122, %v1065
  %v1124 = vpop.permute.xlu0 %1123
  %1127 = vset.pattern.permute.xlu0 0
  %1128 = vperm.xlu0 %1127, %v1066
  %v1129 = vpop.permute.xlu0 %1128
  %1132 = vset.pattern.permute.xlu0 0
  %1133 = vperm.xlu0 %1132, %v1067
  %v1134 = vpop.permute.xlu0 %1133
  %1137 = vset.pattern.permute.xlu0 0
  %1138 = vperm.xlu0 %1137, %v1068
  %v1139 = vpop.permute.xlu0 %1138
  %1142 = vset.pattern.permute.xlu0 0
  %1143 = vperm.xlu0 %1142, %v1069
  %v1144 = vpop.permute.xlu0 %1143
  %1147 = vset.pattern.permute.xlu0 0
  %1148 = vperm.xlu0 %1147, %v1070
  %v1149 = vpop.permute.xlu0 %1148
  %v1151 = vmul.f32 %v993, %v1074
  %v1152 = vmul.f32 %v996, %v1079
  %v1153 = vmul.f32 %v1001, %v1084
  %v1154 = vmul.f32 %v1004, %v1089
  %v1155 = vmul.f32 %v1009, %v1094
  %v1156 = vmul.f32 %v1012, %v1099
  %v1157 = vmul.f32 %v1017, %v1104
  %v1158 = vmul.f32 %v1020, %v1109
  %v1159 = vmul.f32 %v1025, %v1114
  %v1160 = vmul.f32 %v1028, %v1119
  %v1161 = vmul.f32 %v1033, %v1124
  %v1162 = vmul.f32 %v1036, %v1129
  %v1163 = vmul.f32 %v1041, %v1134
  %v1164 = vmul.f32 %v1044, %v1139
  %v1165 = vmul.f32 %v1049, %v1144
  %v1166 = vmul.f32 %v1052, %v1149
  %v1167 = vld [vmem:[%s5] sm:$0x1]
  %v1169 = vlaneseq
  %v1170 = vshrl.u32 %v1169, 7
  %v1171 = vsub.s32 0, %v1170
  %v1172 = vrot.slane %v1167, %v1171
  %v1174 = vadd.f32 %v1151, %v1172
  %v1175 = vadd.f32 %v1152, %v1172
  %v1176 = vadd.f32 %v1153, %v1172
  %v1177 = vadd.f32 %v1154, %v1172
  %v1178 = vadd.f32 %v1155, %v1172
  %v1179 = vadd.f32 %v1156, %v1172
  %v1180 = vadd.f32 %v1157, %v1172
  %v1181 = vadd.f32 %v1158, %v1172
  %v1182 = vadd.f32 %v1159, %v1172
  %v1183 = vadd.f32 %v1160, %v1172
  %v1184 = vadd.f32 %v1161, %v1172
  %v1185 = vadd.f32 %v1162, %v1172
  %v1186 = vadd.f32 %v1163, %v1172
  %v1187 = vadd.f32 %v1164, %v1172
  %v1188 = vadd.f32 %v1165, %v1172
  %v1189 = vadd.f32 %v1166, %v1172
  %1190 = vst [vmem:[%s10] sm:$0xff] %v1174
  %1191 = vst [vmem:[%s10 + $0x8] sm:$0xff] %v1175
  %1192 = vst [vmem:[%s10 + $0x10] sm:$0xff] %v1176
  %1193 = vst [vmem:[%s10 + $0x18] sm:$0xff] %v1177
  %1194 = vst [vmem:[%s10 + $0x20] sm:$0xff] %v1178
  %1195 = vst [vmem:[%s10 + $0x28] sm:$0xff] %v1179
  %1196 = vst [vmem:[%s10 + $0x30] sm:$0xff] %v1180
  %1197 = vst [vmem:[%s10 + $0x38] sm:$0xff] %v1181
  %1198 = vst [vmem:[%s10 + $0x40] sm:$0xff] %v1182
  %1199 = vst [vmem:[%s10 + $0x48] sm:$0xff] %v1183
  %1200 = vst [vmem:[%s10 + $0x50] sm:$0xff] %v1184
  %1201 = vst [vmem:[%s10 + $0x58] sm:$0xff] %v1185
  %1202 = vst [vmem:[%s10 + $0x60] sm:$0xff] %v1186
  %1203 = vst [vmem:[%s10 + $0x68] sm:$0xff] %v1187
  %1204 = vst [vmem:[%s10 + $0x70] sm:$0xff] %v1188
  %1205 = vst [vmem:[%s10 + $0x78] sm:$0xff] %v1189
  // Predicated region
  $region42: #{_encoder_forward.1} parent=0 // pred_check
    _
  $region43: #{_encoder_forward.1} parent=0 // pred_check_branch
    %1207 = sbr.rel (0) target = $region45
  $region44: #{_encoder_forward.1} parent=0 // pred_region
    _
  $region45: #{_encoder_forward.1} parent=0 // pred_fallthru
    _
  // Predicated region
  $region46: #{_encoder_forward.1} parent=0 // pred_check
    _
  $region47: #{_encoder_forward.1} parent=0 // pred_check_branch
    %1209 = sbr.rel (0) target = $region49
  $region48: #{_encoder_forward.1} parent=0 // pred_region
    _
  $region49: #{_encoder_forward.1} parent=0 // pred_fallthru
    _

</llo_original>
